<compile_context>
chip_gen: v7x
topology: tpu7x:2x2x1
jax: 0.10.0
libtpu: 0.0.40
codegen_flags: <defaults>
</compile_context>

<pallas_src>
import jax
import jax.numpy as jnp
from jax import lax
from jax.experimental import pallas as pl
from jax.experimental.pallas import tpu as pltpu

_MIB = 1024 * 1024


def _round_up(a: int, b: int) -> int:
    return (a + b - 1) // b * b


def _sublane_align(dtype) -> int:
    # Native sublane packing: 8 rows/vreg at 4B, 16 at 2B, 32 at 1B.
    return max(8, 32 // jnp.dtype(dtype).itemsize)


def _linear_kernel_acc(x_ref, w_ref, o_ref, acc_ref):
    """One (tm, tn) output tile; K is the innermost (reduction) grid axis.

    x_ref:   (tm, tk)  activation tile
    w_ref:   (tn, tk)  weight tile, PyTorch [N, K] layout (no transpose needed)
    o_ref:   (tm, tn)  output tile (tn multiple of 128 -> lane-dense stores)
    acc_ref: (tm, tn)  f32 VMEM accumulator, resident across the K grid axis
    """

    @pl.when(pl.program_id(2) == 0)
    def _():
        acc_ref[...] = jnp.zeros_like(acc_ref)

    # y_tile += x_tile @ w_tile.T  (contract K = dim 1 of both operands; this
    # lowers to the MXU with the transposed RHS handled natively -- the same
    # contraction pattern flash attention uses for q @ k^T).
    acc_ref[...] += lax.dot_general(
        x_ref[...],
        w_ref[...],
        dimension_numbers=(((1,), (1,)), ((), ())),
        preferred_element_type=jnp.float32,
    )

    @pl.when(pl.program_id(2) == pl.num_programs(2) - 1)
    def _():
        o_ref[...] = acc_ref[...].astype(o_ref.dtype)


def _linear_kernel_single_k(x_ref, w_ref, o_ref):
    """Fast path: whole (padded) K fits in one tile -> no accumulator scratch."""
    o_ref[...] = lax.dot_general(
        x_ref[...],
        w_ref[...],
        dimension_numbers=(((1,), (1,)), ((), ())),
        preferred_element_type=jnp.float32,
    ).astype(o_ref.dtype)


class PallasLinear:
    """Bias-free nn.Linear: y = x @ W.T, W stored PyTorch-style [N, K].

    Weight padding / casting happens ONCE here (it is a parameter), so the
    forward path only pads/casts the activations.
    """

    def __init__(self, weight: jax.Array, *, compute_dtype=None,
                 tm: int = 256, tn: int = 512, tk: int = 512):
        N, K = weight.shape
        self.N, self.K = N, K

        if compute_dtype is not None:
            if jnp.issubdtype(jnp.dtype(compute_dtype), jnp.integer):
                # v7x MXU has no int8/int4 path (bf16/fp8 only).
                raise ValueError("integer compute_dtype is not supported; use bf16/f32")
            weight = weight.astype(compute_dtype)
        self.compute_dtype = compute_dtype

        # Lane-dim tiles: prefer 256-multiples so the 2x256x256 MXU on v6e/v7x
        # runs full-width; fall back to 128 for tiny dims (block == full dim).
        n_al = 256 if _round_up(N, 128) >= 256 else 128
        k_al = 256 if _round_up(K, 128) >= 256 else 128
        self.tn = min(_round_up(tn, n_al), _round_up(N, n_al))
        self.tk = min(_round_up(tk, k_al), _round_up(K, k_al))
        self.tm_max = tm

        self.Np = _round_up(N, self.tn)
        self.Kp = _round_up(K, self.tk)
        self.k_steps = self.Kp // self.tk

        # One-time weight preparation (kept resident in HBM in padded form).
        if (self.Np, self.Kp) != (N, K):
            weight = jnp.pad(weight, ((0, self.Np - N), (0, self.Kp - K)))
        self.weight = weight

    def __call__(self, x: jax.Array) -> jax.Array:
        M, K = x.shape
        assert K == self.K, "in_features mismatch"
        out_dtype = x.dtype

        if self.compute_dtype is not None:
            x = x.astype(self.compute_dtype)

        # tm: as large as the (padded) M allows, aligned to dtype sublane packing.
        m_al = _sublane_align(x.dtype)
        tm = max(m_al, min(_round_up(self.tm_max, m_al), _round_up(M, m_al)))
        Mp = _round_up(M, tm)

        if (Mp, self.Kp) != (M, K):
            x = jnp.pad(x, ((0, Mp - M), (0, self.Kp - K)))

        tn, tk = self.tn, self.tk

        # Footprint-derived VMEM budget: double-buffered x/w/out tiles + f32 acc,
        # with 2x margin; floor 16 MiB, cap 48 MiB (headroom on v7x's 64 MiB).
        xb = x.dtype.itemsize
        wb = self.weight.dtype.itemsize
        ob = jnp.dtype(out_dtype).itemsize
        footprint = (2 * tm * tk * xb
                     + 2 * tn * tk * wb
                     + 2 * tm * tn * ob
                     + (tm * tn * 4 if self.k_steps > 1 else 0))
        vmem_limit = int(min(max(2 * footprint, 16 * _MIB), 48 * _MIB))

        if self.k_steps == 1:
            # Single K step: no accumulator, direct store.
            out = pl.pallas_call(
                _linear_kernel_single_k,
                out_shape=jax.ShapeDtypeStruct((Mp, self.Np), out_dtype),
                grid=(Mp // tm, self.Np // tn),
                in_specs=[
                    pl.BlockSpec((tm, tk), lambda i, j: (i, 0)),   # x tile
                    pl.BlockSpec((tn, tk), lambda i, j: (j, 0)),   # W tile [N,K]
                ],
                out_specs=pl.BlockSpec((tm, tn), lambda i, j: (i, j)),
                compiler_params=pltpu.CompilerParams(
                    dimension_semantics=("parallel", "parallel"),
                    vmem_limit_bytes=vmem_limit,
                ),
            )(x, self.weight)
        else:
            out = pl.pallas_call(
                _linear_kernel_acc,
                out_shape=jax.ShapeDtypeStruct((Mp, self.Np), out_dtype),
                grid=(Mp // tm, self.Np // tn, self.k_steps),
                in_specs=[
                    pl.BlockSpec((tm, tk), lambda i, j, k: (i, k)),  # x tile
                    pl.BlockSpec((tn, tk), lambda i, j, k: (j, k)),  # W tile [N,K]
                ],
                out_specs=pl.BlockSpec((tm, tn), lambda i, j, k: (i, j)),
                scratch_shapes=[pltpu.VMEM((tm, tn), jnp.float32)],
                compiler_params=pltpu.CompilerParams(
                    dimension_semantics=("parallel", "parallel", "arbitrary"),
                    vmem_limit_bytes=vmem_limit,
                ),
            )(x, self.weight)

        if (Mp, self.Np) != (M, self.N):
            out = out[:M, :self.N]
        return out


def linear_no_bias(x, weight, **kwargs):
    """One-shot convenience wrapper (for repeated calls, build PallasLinear once)."""
    return PallasLinear(weight, **kwargs)(x)


if __name__ == "__main__":
    key = jax.random.PRNGKey(0)
    kx, kw, kx2, kw2 = jax.random.split(key, 4)

    # --- Test 1: small shapes consistent with the module's forward ----------
    batch, in_features, out_features = 8, 32, 16
    x = jax.random.normal(kx, (batch, in_features), dtype=jnp.float32)
    # Stand-in for the `weights` tensor copied into nn.Linear in __init__;
    # PyTorch layout [out_features, in_features].
    weight = jax.random.normal(kw, (out_features, in_features), dtype=jnp.float32)

    model = PallasLinear(weight)                     # weight padded/cast once here
    y = jax.block_until_ready(model(x))
    y_ref = jnp.matmul(x, weight.T, precision=lax.Precision.HIGHEST)
    assert y.shape == (batch, out_features)
    assert jnp.allclose(y, y_ref, atol=1e-3, rtol=1e-3)

    # --- Test 2: multi-tile grid exercising the accumulator path ------------
    M2, K2, N2 = 512, 1024, 1024                     # grid (2, 2, 2) with defaults
    x2 = jax.random.normal(kx2, (M2, K2), dtype=jnp.float32)
    w2 = jax.random.normal(kw2, (N2, K2), dtype=jnp.float32)

    model2 = PallasLinear(w2)
    y2 = jax.block_until_ready(model2(x2))
    y2_ref = jnp.matmul(x2, w2.T, precision=lax.Precision.HIGHEST)
    assert y2.shape == (M2, N2)
    assert jnp.allclose(y2, y2_ref, atol=5e-2, rtol=1e-2)

    print("KERNEL_OK")
</pallas_src>

<mosaic_0001>
module attributes {stable_mosaic.version = 11 : i64} {
  func.func @_linear_kernel_single_k(%arg0: i32, %arg1: i32, %arg2: memref<8x128xf32, #tpu.memory_space<vmem>>, %arg3: memref<128x128xf32, #tpu.memory_space<vmem>>, %arg4: memref<8x128xf32, #tpu.memory_space<vmem>>) attributes {dimension_semantics = [#tpu.dimension_semantics<parallel>, #tpu.dimension_semantics<parallel>], iteration_bounds = array<i64: 1, 1>, scalar_prefetch = 0 : i64, scratch_operands = 0 : i64, tpu.core_type = #tpu.core_type<tc>, window_params = [{transform_indices = @transform_0, window_bounds = array<i64: 8, 128>}, {transform_indices = @transform_1, window_bounds = array<i64: 128, 128>}, {transform_indices = @transform_2, window_bounds = array<i64: 8, 128>}]} {
    %c0 = arith.constant 0 : index
    %c0_0 = arith.constant 0 : index
    %0 = vector.load %arg2[%c0, %c0_0] : memref<8x128xf32, #tpu.memory_space<vmem>>, vector<8x128xf32>
    %c0_1 = arith.constant 0 : index
    %c0_2 = arith.constant 0 : index
    %1 = vector.load %arg3[%c0_1, %c0_2] : memref<128x128xf32, #tpu.memory_space<vmem>>, vector<128x128xf32>
    %cst = arith.constant dense<0.000000e+00> : vector<8x128xf32>
    %2 = tpu.matmul %0, %1, %cst {dimension_numbers = #tpu.dot_dimension_numbers<[1], [1], [0], [0], [0, 0, 1, 0], [], []>} : vector<8x128xf32>, vector<128x128xf32>, vector<8x128xf32> -> vector<8x128xf32>
    %c0_3 = arith.constant 0 : index
    %c0_4 = arith.constant 0 : index
    %3 = vector.load %arg4[%c0_3, %c0_4] : memref<8x128xf32, #tpu.memory_space<vmem>>, vector<8x128xf32>
    tpu.vector_store %arg4[%c0_3, %c0_4], %2 {strides = array<i32>} : memref<8x128xf32, #tpu.memory_space<vmem>>, vector<8x128xf32>,
    return
  }
  func.func @transform_0(%arg0: i32, %arg1: i32) -> (i32, i32) {
    %c0_i32 = arith.constant 0 : i32
    %c0_i32_0 = arith.constant 0 : i32
    return %arg0, %c0_i32 : i32, i32
  }
  func.func @transform_1(%arg0: i32, %arg1: i32) -> (i32, i32) {
    %c0_i32 = arith.constant 0 : i32
    %c0_i32_0 = arith.constant 0 : i32
    return %arg1, %c0_i32 : i32, i32
  }
  func.func @transform_2(%arg0: i32, %arg1: i32) -> (i32, i32) {
    %c0_i32 = arith.constant 0 : i32
    return %arg0, %arg1 : i32, i32
  }
}

</mosaic_0001>

<llo_original>
// kernel: tpu_custom_call.1
$region0: #{tpu_custom_call.1}
  #allocation0 [shape = 'u32[]', space=smem, size = 0x4, offset = 0x4, fixed_abs, tag = 'smem constant byte address 0x4 - core index']
  #allocation1 [shape = 'u32[144,128]{1,0:T(1,128)}', space=vmem, size = 0x12000, scoped, tag = 'internal scratch']
  %s0 = inlined_call_operand.hbm [shape: f32[8,128], index: 0, kind: input, shape index: {}]
  %s1 = inlined_call_operand.hbm [shape: f32[128,128], index: 1, kind: input, shape index: {}]
  %s2 = inlined_call_operand.hbm [shape: f32[8,128], index: 2, kind: output, shape index: {}]
  %s3 = sld [smem:[#allocation0]]
  $region26: #{tpu_custom_call.1} parent=0
    _
  %s5 = ssub.s32 1, %s3
  %s6 = scalar_select 0, %s5, %s3
  $region1: #{tpu_custom_call.1} parent=0
    #allocation2 [shape = 'u8[4096]{0}', space=vmem, size = 0x1000, scoped, tag = 'input window, operand 0, single buffered']
    #allocation3 [shape = 's32[1]{0}', space=sflag, size = 0x4, scoped, tag = 'scoped memory for tpu_custom_call.1']
    #allocation4 [shape = 's32[1]{0}', space=sflag, size = 0x4, scoped, tag = 'scoped memory for tpu_custom_call.1']
    #allocation5 [shape = 'u8[65536]{0}', space=vmem, size = 0x10000, scoped, tag = 'input window, operand 1, single buffered']
    #allocation6 [shape = 's32[1]{0}', space=sflag, size = 0x4, scoped, tag = 'scoped memory for tpu_custom_call.1']
    #allocation7 [shape = 'u8[4096]{0}', space=vmem, size = 0x1000, scoped, tag = 'output window, operand 0, single buffered']
    %7 = vsyncpa [#allocation3], 0
    %8 = vsyncpa [#allocation6], 0
    %9 = vsyncpa [#allocation4], 0
    // Predicated region
    $region2: #{tpu_custom_call.1} parent=1 // pred_check
      _
    $region3: #{tpu_custom_call.1} parent=1 // pred_check_branch
      %11 = sbr.rel (0) target = $region5
    $region4: #{tpu_custom_call.1} parent=1 // pred_region
      %s13 = ssub.s32 128, 128
      %14 = vsyncadd [#allocation3], %s13
      %s16 = sshll.u32 [#allocation2], 4
      %s17 = int_to_ptr.vmem [resolvable:$true] %s16
      %19 = dma.hbm_to_vmem [thread:$0]  %s0, 128, %s17, [#allocation3]
    $region5: #{tpu_custom_call.1} parent=1 // pred_fallthru
      _
    // Predicated region
    $region6: #{tpu_custom_call.1} parent=1 // pred_check
      _
    $region7: #{tpu_custom_call.1} parent=1 // pred_check_branch
      %21 = sbr.rel (0) target = $region9
    $region8: #{tpu_custom_call.1} parent=1 // pred_region
      %s23 = ssub.s32 2048, 2048
      %24 = vsyncadd [#allocation6], %s23
      %s25 = sshll.u32 [#allocation5], 4
      %s26 = int_to_ptr.vmem [resolvable:$true] %s25
      %31 = dma.hbm_to_vmem [thread:$0]  %s1, 2048, %s26, [#allocation6], 128, 128, 8
    $region9: #{tpu_custom_call.1} parent=1 // pred_fallthru
      _
    // Predicated region
    $region10: #{tpu_custom_call.1} parent=1 // pred_check
      _
    $region11: #{tpu_custom_call.1} parent=1 // pred_check_branch
      %33 = sbr.rel (0) target = $region13
    $region12: #{tpu_custom_call.1} parent=1 // pred_region
      %34 = dma.done [#allocation3], 128
    $region13: #{tpu_custom_call.1} parent=1 // pred_fallthru
      _
    // Predicated region
    $region14: #{tpu_custom_call.1} parent=1 // pred_check
      _
    $region15: #{tpu_custom_call.1} parent=1 // pred_check_branch
      %36 = sbr.rel (0) target = $region17
    $region16: #{tpu_custom_call.1} parent=1 // pred_region
      %37 = dma.done [#allocation6], 2048
    $region17: #{tpu_custom_call.1} parent=1 // pred_fallthru
      _
    %v38 = vld [vmem:[#allocation2] sm:$0xff]
    %v39 = vld [vmem:[#allocation5] sm:$0xff]
    %v40 = vld [vmem:[#allocation5 + $0x8] sm:$0xff]
    %v41 = vld [vmem:[#allocation5 + $0x10] sm:$0xff]
    %v42 = vld [vmem:[#allocation5 + $0x18] sm:$0xff]
    %v43 = vld [vmem:[#allocation5 + $0x20] sm:$0xff]
    %v44 = vld [vmem:[#allocation5 + $0x28] sm:$0xff]
    %v45 = vld [vmem:[#allocation5 + $0x30] sm:$0xff]
    %v46 = vld [vmem:[#allocation5 + $0x38] sm:$0xff]
    %v47 = vld [vmem:[#allocation5 + $0x40] sm:$0xff]
    %v48 = vld [vmem:[#allocation5 + $0x48] sm:$0xff]
    %v49 = vld [vmem:[#allocation5 + $0x50] sm:$0xff]
    %v50 = vld [vmem:[#allocation5 + $0x58] sm:$0xff]
    %v51 = vld [vmem:[#allocation5 + $0x60] sm:$0xff]
    %v52 = vld [vmem:[#allocation5 + $0x68] sm:$0xff]
    %v53 = vld [vmem:[#allocation5 + $0x70] sm:$0xff]
    %v54 = vld [vmem:[#allocation5 + $0x78] sm:$0xff]
    %55 = vmatprep.subr.mxu0 0.0
    %56 = vmatpush1.xpose.msra.mxu0 %v39
    %57 = vmatprep.subr.mxu0 0.0
    %58 = vmatpush1.xpose.msra.mxu0 %v40
    %59 = vmatprep.subr.mxu0 0.0
    %60 = vmatpush1.xpose.msra.mxu0 %v41
    %61 = vmatprep.subr.mxu0 0.0
    %62 = vmatpush1.xpose.msra.mxu0 %v42
    %63 = vmatprep.subr.mxu0 0.0
    %64 = vmatpush1.xpose.msra.mxu0 %v43
    %65 = vmatprep.subr.mxu0 0.0
    %66 = vmatpush1.xpose.msra.mxu0 %v44
    %67 = vmatprep.subr.mxu0 0.0
    %68 = vmatpush1.xpose.msra.mxu0 %v45
    %69 = vmatprep.subr.mxu0 0.0
    %70 = vmatpush1.xpose.msra.mxu0 %v46
    %71 = vmatprep.subr.mxu0 0.0
    %72 = vmatpush1.xpose.msra.mxu0 %v47
    %73 = vmatprep.subr.mxu0 0.0
    %74 = vmatpush1.xpose.msra.mxu0 %v48
    %75 = vmatprep.subr.mxu0 0.0
    %76 = vmatpush1.xpose.msra.mxu0 %v49
    %77 = vmatprep.subr.mxu0 0.0
    %78 = vmatpush1.xpose.msra.mxu0 %v50
    %79 = vmatprep.subr.mxu0 0.0
    %80 = vmatpush1.xpose.msra.mxu0 %v51
    %81 = vmatprep.subr.mxu0 0.0
    %82 = vmatpush1.xpose.msra.mxu0 %v52
    %83 = vmatprep.subr.mxu0 0.0
    %84 = vmatpush1.xpose.msra.mxu0 %v53
    %85 = vmatprep.subr.mxu0 0.0
    %86 = vmatpush1.xpose.msra.mxu0 %v54
    %87 = vmatprep.subr.mxu0 0.0
    %88 = vmatpush1.xpose.msra.mxu0 0.0
    %89 = vmatprep.subr.mxu0 0.0
    %90 = vmatpush1.xpose.msra.mxu0 0.0
    %91 = vmatprep.subr.mxu0 0.0
    %92 = vmatpush1.xpose.msra.mxu0 0.0
    %93 = vmatprep.subr.mxu0 0.0
    %94 = vmatpush1.xpose.msra.mxu0 0.0
    %95 = vmatprep.subr.mxu0 0.0
    %96 = vmatpush1.xpose.msra.mxu0 0.0
    %97 = vmatprep.subr.mxu0 0.0
    %98 = vmatpush1.xpose.msra.mxu0 0.0
    %99 = vmatprep.subr.mxu0 0.0
    %100 = vmatpush1.xpose.msra.mxu0 0.0
    %101 = vmatprep.subr.mxu0 0.0
    %102 = vmatpush1.xpose.msra.mxu0 0.0
    %103 = vmatprep.subr.mxu0 0.0
    %104 = vmatpush1.xpose.msra.mxu0 0.0
    %105 = vmatprep.subr.mxu0 0.0
    %106 = vmatpush1.xpose.msra.mxu0 0.0
    %107 = vmatprep.subr.mxu0 0.0
    %108 = vmatpush1.xpose.msra.mxu0 0.0
    %109 = vmatprep.subr.mxu0 0.0
    %110 = vmatpush1.xpose.msra.mxu0 0.0
    %111 = vmatprep.subr.mxu0 0.0
    %112 = vmatpush1.xpose.msra.mxu0 0.0
    %113 = vmatprep.subr.mxu0 0.0
    %114 = vmatpush1.xpose.msra.mxu0 0.0
    %115 = vmatprep.subr.mxu0 0.0
    %116 = vmatpush1.xpose.msra.mxu0 0.0
    %117 = vmatprep.subr.mxu0 0.0
    %118 = vmatpush1.xpose.msra.mxu0 0.0
    %119 = vmatprep.mubr.f32.mxu0 0.0
    %120 = vmatmul.mubr.f32.gmra.mrb[0].mxu0 %v38
    %v121 = vpop.f32.mrb[0].mxu0
    %v122 = vadd.f32 0.0, %v121
    %v123 = vpop.f32.mrb[0].mxu0
    %124 = vdwg.mxu0
    %125 = vst [vmem:[#allocation7] sm:$0xff] %v122
    // Predicated region
    $region18: #{tpu_custom_call.1} parent=1 // pred_check
      _
    $region19: #{tpu_custom_call.1} parent=1 // pred_check_branch
      %127 = sbr.rel (0) target = $region21
    $region20: #{tpu_custom_call.1} parent=1 // pred_region
      %s129 = ssub.s32 128, 128
      %130 = vsyncadd [#allocation4], %s129
      %s132 = sshll.u32 [#allocation7], 4
      %s133 = int_to_ptr.vmem [resolvable:$true] %s132
      %135 = dma.vmem_to_hbm [thread:$0]  %s133, 128, %s2, [#allocation4]
    $region21: #{tpu_custom_call.1} parent=1 // pred_fallthru
      _
    // Predicated region
    $region22: #{tpu_custom_call.1} parent=1 // pred_check
      _
    $region23: #{tpu_custom_call.1} parent=1 // pred_check_branch
      %137 = sbr.rel (0) target = $region25
    $region24: #{tpu_custom_call.1} parent=1 // pred_region
      %138 = dma.done [#allocation4], 128
    $region25: #{tpu_custom_call.1} parent=1 // pred_fallthru
      _
    %139 = vsyncpa [#allocation3], 1
    %140 = vsyncpa [#allocation6], 1
    %141 = vsyncpa [#allocation4], 1

</llo_original>
